<compile_context>
chip_gen: v7x
topology: tpu7x:2x2x1
jax: 0.10.0
libtpu: 0.0.40
codegen_flags: <defaults>
</compile_context>

<pallas_src>
import functools

import jax
import jax.numpy as jnp
from jax.experimental import pallas as pl
from jax.experimental.pallas import tpu as pltpu

V_PAD = 128  # embedding vocab (100) padded to one full sublane/lane width


def _round_up(x, m):
    return ((x + m - 1) // m) * m


def _swish_kernel(x):
    # x * sigmoid(x); exp and approximate reciprocal both use the EUP slot.
    return x * pl.reciprocal(1.0 + jnp.exp(-x), approx=True)


def embedding_block_kernel(z_ref, rbf_ref, w_rbf_ref, w_emb1_ref, w_emb2_ref,
                           w3_ref, out_ref, *, use_activation, compute_dtype):
    T = z_ref.shape[1]

    # ---- in-kernel embedding gather via one-hot MXU matmuls ---------------
    z = z_ref[...]                                                 # [2, T] i32
    row_ids = jax.lax.broadcasted_iota(jnp.int32, (V_PAD, T), 0)   # [128, T]
    oh_i = (row_ids == z[0:1, :]).astype(compute_dtype)            # [128, T]
    oh_j = (row_ids == z[1:2, :]).astype(compute_dtype)            # [128, T]

    acc = jnp.dot(w_emb1_ref[...], oh_i, preferred_element_type=jnp.float32)
    acc = acc + jnp.dot(w_emb2_ref[...], oh_j,
                        preferred_element_type=jnp.float32)        # [F, T] f32

    # ---- Dense(num_radial -> F) on rbf, then its contribution -------------
    if use_activation:
        rbf_h = jnp.dot(w_rbf_ref[...], rbf_ref[...],
                        preferred_element_type=jnp.float32)        # [F, T] f32
        rbf_h = _swish_kernel(rbf_h)                               # f32 math
        acc = acc + jnp.dot(w3_ref[...], rbf_h.astype(compute_dtype),
                            preferred_element_type=jnp.float32)
        acc = _swish_kernel(acc)
    else:
        # w_rbf_ref already holds (W_rbf @ W3)^T -> single fused matmul.
        acc = acc + jnp.dot(w_rbf_ref[...], rbf_ref[...],
                            preferred_element_type=jnp.float32)

    out_ref[...] = acc.astype(out_ref.dtype)


def embedding_block(Z, rbf, idnb_i, idnb_j, params, *,
                    use_activation=True, edge_tile=2048,
                    compute_dtype=jnp.bfloat16, out_dtype=jnp.float32,
                    out_transposed=False):
    """Pallas TPU forward of DimeNet EmbeddingBlock.

    Returns [E, F] (or lane-dense [F, E] if out_transposed=True, saving the
    wrapper-side transpose when downstream can consume that layout).
    """
    emb_table = params["embedding"]   # [100, F], row 0 zero (padding_idx=0)
    w_rbf = params["w_rbf"]           # [R, F]
    w_dense = params["w_dense"]       # [3F, F]

    F = emb_table.shape[1]
    R = rbf.shape[-1]
    E = rbf.shape[0]
    # One-hot gather maps indices outside [0, V_PAD) to a zero row; with the
    # 100-entry vocab and padding_idx=0 every valid index fits in 128.
    assert emb_table.shape[0] <= V_PAD
    assert edge_tile % 256 == 0, "edge_tile must be a multiple of 256"

    # Clamp the tile to the padded edge count so small problems don't over-pad.
    # At realistic DimeNet edge counts this still leaves >=2 grid steps, so the
    # "parallel" grid axis can shard edge tiles across v7x's two TensorCores.
    edge_tile = min(edge_tile, _round_up(E, 256))
    E_pad = _round_up(E, edge_tile)
    pe = E_pad - E

    hi = jax.lax.Precision.HIGHEST

    # ---- constant-size parameter folding (independent of E) ---------------
    w1, w2, w3 = w_dense[:F], w_dense[F:2 * F], w_dense[2 * F:]
    pad_v = V_PAD - emb_table.shape[0]
    w_emb1_T = jnp.pad(jnp.dot(emb_table, w1, precision=hi),
                       ((0, pad_v), (0, 0))).T            # [F, 128] = (emb@W1)^T
    w_emb2_T = jnp.pad(jnp.dot(emb_table, w2, precision=hi),
                       ((0, pad_v), (0, 0))).T            # [F, 128] = (emb@W2)^T

    R_pad = _round_up(max(R, 16), 16)    # sublane-friendly for f32 and bf16
    if use_activation:
        w_rbf_eff_T = jnp.pad(w_rbf, ((0, R_pad - R), (0, 0))).T     # [F, R_pad]
    else:
        # No nonlinearity between the two matmuls -> fold them offline.
        w_rbf_eff_T = jnp.pad(jnp.dot(w_rbf, w3, precision=hi),
                              ((0, R_pad - R), (0, 0))).T            # [F, R_pad]
    w3_T = w3.T                                                      # [F, F]

    # ---- lane-dense per-edge operands --------------------------------------
    z2 = jnp.stack([Z[idnb_i].astype(jnp.int32),
                    Z[idnb_j].astype(jnp.int32)], axis=0)            # [2, E]
    z2 = jnp.pad(z2, ((0, 0), (0, pe)))     # padded edges -> index 0 (zero row)
    rbf_T = jnp.pad(rbf.T, ((0, R_pad - R), (0, pe)))                # [R_pad, E_pad]

    cdt = compute_dtype
    rbf_T = rbf_T.astype(cdt)
    w_rbf_eff_T = w_rbf_eff_T.astype(cdt)
    w_emb1_T = w_emb1_T.astype(cdt)
    w_emb2_T = w_emb2_T.astype(cdt)
    w3_T = w3_T.astype(cdt)

    kernel = functools.partial(embedding_block_kernel,
                               use_activation=use_activation,
                               compute_dtype=cdt)

    # Rough VMEM footprint; only raise the scoped limit when actually needed
    # (relevant on v5e's 16 MiB default once edge_tile grows very large).
    cdt_b = jnp.dtype(cdt).itemsize
    out_b = jnp.dtype(out_dtype).itemsize
    est = (2 * (edge_tile * (2 * 4 + R_pad * cdt_b + F * out_b)          # blocks
                + (F * R_pad + 2 * F * V_PAD + F * F) * cdt_b)           # weights
           + edge_tile * V_PAD * (4 + 2 * cdt_b)                         # iota + one-hots
           + 2 * edge_tile * F * 4)                                      # f32 acc/rbf_h
    vmem_limit = None if est < 12 * 2**20 else int(min(2 * est, 64 * 2**20))

    grid = (E_pad // edge_tile,)
    out_T = pl.pallas_call(
        kernel,
        out_shape=jax.ShapeDtypeStruct((F, E_pad), out_dtype),
        grid_spec=pltpu.PrefetchScalarGridSpec(
            num_scalar_prefetch=0,
            grid=grid,
            in_specs=[
                pl.BlockSpec((2, edge_tile), lambda i: (0, i)),       # [z_i; z_j]
                pl.BlockSpec((R_pad, edge_tile), lambda i: (0, i)),   # rbf^T
                pl.BlockSpec((F, R_pad), lambda i: (0, 0)),           # W_rbf^T (or folded)
                pl.BlockSpec((F, V_PAD), lambda i: (0, 0)),           # (emb@W1)^T
                pl.BlockSpec((F, V_PAD), lambda i: (0, 0)),           # (emb@W2)^T
                pl.BlockSpec((F, F), lambda i: (0, 0)),               # W3^T
            ],
            out_specs=pl.BlockSpec((F, edge_tile), lambda i: (0, i)),
        ),
        compiler_params=pltpu.CompilerParams(
            dimension_semantics=("parallel",),
            vmem_limit_bytes=vmem_limit),
    )(z2, rbf_T, w_rbf_eff_T, w_emb1_T, w_emb2_T, w3_T)

    out_T = out_T[:, :E]
    return out_T if out_transposed else out_T.T


def _reference(Z, rbf, idnb_i, idnb_j, params, use_activation=True):
    """Pure-JAX reference matching the PyTorch forward literally."""
    act = (lambda v: v * jax.nn.sigmoid(v)) if use_activation else (lambda v: v)
    rbf_h = act(rbf @ params["w_rbf"])
    x = params["embedding"][Z]
    x1 = x[idnb_i]
    x2 = x[idnb_j]
    cat = jnp.concatenate((x1, x2, rbf_h), axis=-1)
    return act(cat @ params["w_dense"])


def init_params(key, emb_size, num_radial):
    k_emb, k_rbf, k_dense = jax.random.split(key, 3)
    emb = jax.random.normal(k_emb, (100, emb_size), jnp.float32)
    emb = emb.at[0].set(0.0)  # padding_idx=0
    w_rbf = jax.random.normal(k_rbf, (num_radial, emb_size), jnp.float32)
    w_rbf = w_rbf * (1.0 / jnp.sqrt(num_radial))
    w_dense = jax.random.normal(k_dense, (3 * emb_size, emb_size), jnp.float32)
    w_dense = w_dense * (1.0 / jnp.sqrt(3 * emb_size))
    return {"embedding": emb, "w_rbf": w_rbf, "w_dense": w_dense}


if __name__ == "__main__":
    emb_size = 32      # F
    num_radial = 6     # R
    n_atoms = 10
    n_edges = 16

    key = jax.random.PRNGKey(0)
    k_p, k_z, k_r, k_i, k_j = jax.random.split(key, 5)

    params = init_params(k_p, emb_size, num_radial)

    Z = jax.random.randint(k_z, (n_atoms,), 1, 100, dtype=jnp.int32)
    rbf = jax.random.normal(k_r, (n_edges, num_radial), jnp.float32)
    idnb_i = jax.random.randint(k_i, (n_edges,), 0, n_atoms, dtype=jnp.int32)
    idnb_j = jax.random.randint(k_j, (n_edges,), 0, n_atoms, dtype=jnp.int32)

    ref = _reference(Z, rbf, idnb_i, idnb_j, params, use_activation=True)

    # f32 MXU operands: tight-ish check (tolerance covers the EUP approximate
    # reciprocal used inside the swish).
    out_f32 = embedding_block(Z, rbf, idnb_i, idnb_j, params,
                              use_activation=True,
                              compute_dtype=jnp.float32,
                              out_dtype=jnp.float32)
    out_f32 = jax.block_until_ready(out_f32)
    assert out_f32.shape == (n_edges, emb_size)
    assert jnp.allclose(out_f32, ref, atol=5e-3, rtol=5e-3), "f32 mismatch"

    # bf16 MXU operands + bf16 output (default perf config): loose check.
    out_bf16 = embedding_block(Z, rbf, idnb_i, idnb_j, params,
                               use_activation=True,
                               compute_dtype=jnp.bfloat16,
                               out_dtype=jnp.bfloat16)
    out_bf16 = jax.block_until_ready(out_bf16)
    assert out_bf16.shape == (n_edges, emb_size)
    assert jnp.allclose(out_bf16.astype(jnp.float32), ref,
                        atol=5e-2, rtol=5e-2), "bf16 mismatch"

    # No-activation path exercises the offline (W_rbf @ W3) folding.
    ref_na = _reference(Z, rbf, idnb_i, idnb_j, params, use_activation=False)
    out_na = embedding_block(Z, rbf, idnb_i, idnb_j, params,
                             use_activation=False,
                             compute_dtype=jnp.float32,
                             out_dtype=jnp.float32)
    out_na = jax.block_until_ready(out_na)
    assert jnp.allclose(out_na, ref_na, atol=2e-3, rtol=2e-3), "no-act mismatch"

    print("KERNEL_OK")
</pallas_src>

<mosaic_0001>
module attributes {stable_mosaic.version = 11 : i64} {
  func.func @embedding_block_kernel(%arg0: i32, %arg1: memref<2x256xi32, #tpu.memory_space<vmem>>, %arg2: memref<16x256xf32, #tpu.memory_space<vmem>>, %arg3: memref<32x16xf32, #tpu.memory_space<vmem>>, %arg4: memref<32x128xf32, #tpu.memory_space<vmem>>, %arg5: memref<32x128xf32, #tpu.memory_space<vmem>>, %arg6: memref<32x32xf32, #tpu.memory_space<vmem>>, %arg7: memref<32x256xf32, #tpu.memory_space<vmem>>) attributes {dimension_semantics = [#tpu.dimension_semantics<parallel>], iteration_bounds = array<i64: 1>, scalar_prefetch = 0 : i64, scratch_operands = 0 : i64, tpu.core_type = #tpu.core_type<tc>, window_params = [{transform_indices = @transform_0, window_bounds = array<i64: 2, 256>}, {transform_indices = @transform_1, window_bounds = array<i64: 16, 256>}, {pipeline_mode = #tpu.pipeline_mode<synchronous>, transform_indices = @transform_2, window_bounds = array<i64: 32, 16>}, {pipeline_mode = #tpu.pipeline_mode<synchronous>, transform_indices = @transform_3, window_bounds = array<i64: 32, 128>}, {pipeline_mode = #tpu.pipeline_mode<synchronous>, transform_indices = @transform_4, window_bounds = array<i64: 32, 128>}, {pipeline_mode = #tpu.pipeline_mode<synchronous>, transform_indices = @transform_5, window_bounds = array<i64: 32, 32>}, {transform_indices = @transform_6, window_bounds = array<i64: 32, 256>}]} {
    %c0 = arith.constant 0 : index
    %c0_0 = arith.constant 0 : index
    %0 = vector.load %arg1[%c0, %c0_0] : memref<2x256xi32, #tpu.memory_space<vmem>>, vector<2x256xi32>
    %1 = tpu.iota {dimensions = array<i32: 0>} : vector<128x256xi32>
    %2 = vector.extract_strided_slice %0 {offsets = [0, 0], sizes = [1, 256], strides = [1, 1]} : vector<2x256xi32> to vector<1x256xi32>
    %3 = vector.broadcast %2 : vector<1x256xi32> to vector<128x256xi32>
    %4 = arith.cmpi eq, %1, %3 : vector<128x256xi32>
    %5 = arith.extui %4 : vector<128x256xi1> to vector<128x256xi32>
    %6 = arith.sitofp %5 : vector<128x256xi32> to vector<128x256xf32>
    %7 = vector.extract_strided_slice %0 {offsets = [1, 0], sizes = [1, 256], strides = [1, 1]} : vector<2x256xi32> to vector<1x256xi32>
    %8 = vector.broadcast %7 : vector<1x256xi32> to vector<128x256xi32>
    %9 = arith.cmpi eq, %1, %8 : vector<128x256xi32>
    %10 = arith.extui %9 : vector<128x256xi1> to vector<128x256xi32>
    %11 = arith.sitofp %10 : vector<128x256xi32> to vector<128x256xf32>
    %c0_1 = arith.constant 0 : index
    %c0_2 = arith.constant 0 : index
    %12 = vector.load %arg4[%c0_1, %c0_2] : memref<32x128xf32, #tpu.memory_space<vmem>>, vector<32x128xf32>
    %cst = arith.constant dense<0.000000e+00> : vector<32x256xf32>
    %13 = tpu.matmul %12, %6, %cst {dimension_numbers = #tpu.dot_dimension_numbers<[1], [0], [0], [1], [0, 0, 1, 1], [], []>} : vector<32x128xf32>, vector<128x256xf32>, vector<32x256xf32> -> vector<32x256xf32>
    %c0_3 = arith.constant 0 : index
    %c0_4 = arith.constant 0 : index
    %14 = vector.load %arg5[%c0_3, %c0_4] : memref<32x128xf32, #tpu.memory_space<vmem>>, vector<32x128xf32>
    %cst_5 = arith.constant dense<0.000000e+00> : vector<32x256xf32>
    %15 = tpu.matmul %14, %11, %cst_5 {dimension_numbers = #tpu.dot_dimension_numbers<[1], [0], [0], [1], [0, 0, 1, 1], [], []>} : vector<32x128xf32>, vector<128x256xf32>, vector<32x256xf32> -> vector<32x256xf32>
    %16 = arith.addf %13, %15 : vector<32x256xf32>
    %c0_6 = arith.constant 0 : index
    %c0_7 = arith.constant 0 : index
    %17 = vector.load %arg3[%c0_6, %c0_7] : memref<32x16xf32, #tpu.memory_space<vmem>>, vector<32x16xf32>
    %c0_8 = arith.constant 0 : index
    %c0_9 = arith.constant 0 : index
    %18 = vector.load %arg2[%c0_8, %c0_9] : memref<16x256xf32, #tpu.memory_space<vmem>>, vector<16x256xf32>
    %cst_10 = arith.constant dense<0.000000e+00> : vector<32x256xf32>
    %19 = tpu.matmul %17, %18, %cst_10 {dimension_numbers = #tpu.dot_dimension_numbers<[1], [0], [0], [1], [0, 0, 1, 1], [], []>} : vector<32x16xf32>, vector<16x256xf32>, vector<32x256xf32> -> vector<32x256xf32>
    %cst_11 = arith.constant 0.000000e+00 : f32
    %20 = vector.broadcast %cst_11 : f32 to vector<32x256xf32>
    %21 = arith.subf %20, %19 : vector<32x256xf32>
    %22 = math.exp %21 : vector<32x256xf32>
    %cst_12 = arith.constant 1.000000e+00 : f32
    %23 = vector.broadcast %cst_12 : f32 to vector<32x256xf32>
    %24 = arith.addf %23, %22 : vector<32x256xf32>
    %25 = tpu.reciprocal %24 {approx = true} : vector<32x256xf32> -> vector<32x256xf32>
    %26 = arith.mulf %19, %25 : vector<32x256xf32>
    %c0_13 = arith.constant 0 : index
    %c0_14 = arith.constant 0 : index
    %27 = vector.load %arg6[%c0_13, %c0_14] : memref<32x32xf32, #tpu.memory_space<vmem>>, vector<32x32xf32>
    %cst_15 = arith.constant dense<0.000000e+00> : vector<32x256xf32>
    %28 = tpu.matmul %27, %26, %cst_15 {dimension_numbers = #tpu.dot_dimension_numbers<[1], [0], [0], [1], [0, 0, 1, 1], [], []>} : vector<32x32xf32>, vector<32x256xf32>, vector<32x256xf32> -> vector<32x256xf32>
    %29 = arith.addf %16, %28 : vector<32x256xf32>
    %cst_16 = arith.constant 0.000000e+00 : f32
    %30 = vector.broadcast %cst_16 : f32 to vector<32x256xf32>
    %31 = arith.subf %30, %29 : vector<32x256xf32>
    %32 = math.exp %31 : vector<32x256xf32>
    %cst_17 = arith.constant 1.000000e+00 : f32
    %33 = vector.broadcast %cst_17 : f32 to vector<32x256xf32>
    %34 = arith.addf %33, %32 : vector<32x256xf32>
    %35 = tpu.reciprocal %34 {approx = true} : vector<32x256xf32> -> vector<32x256xf32>
    %36 = arith.mulf %29, %35 : vector<32x256xf32>
    %c0_18 = arith.constant 0 : index
    %c0_19 = arith.constant 0 : index
    %37 = vector.load %arg7[%c0_18, %c0_19] : memref<32x256xf32, #tpu.memory_space<vmem>>, vector<32x256xf32>
    tpu.vector_store %arg7[%c0_18, %c0_19], %36 {strides = array<i32>} : memref<32x256xf32, #tpu.memory_space<vmem>>, vector<32x256xf32>,
    return
  }
  func.func @transform_0(%arg0: i32) -> (i32, i32) {
    %c0_i32 = arith.constant 0 : i32
    %c0_i32_0 = arith.constant 0 : i32
    return %c0_i32, %arg0 : i32, i32
  }
  func.func @transform_1(%arg0: i32) -> (i32, i32) {
    %c0_i32 = arith.constant 0 : i32
    %c0_i32_0 = arith.constant 0 : i32
    return %c0_i32, %arg0 : i32, i32
  }
  func.func @transform_2(%arg0: i32) -> (i32, i32) {
    %c0_i32 = arith.constant 0 : i32
    %c0_i32_0 = arith.constant 0 : i32
    %c0_i32_1 = arith.constant 0 : i32
    return %c0_i32, %c0_i32_0 : i32, i32
  }
  func.func @transform_3(%arg0: i32) -> (i32, i32) {
    %c0_i32 = arith.constant 0 : i32
    %c0_i32_0 = arith.constant 0 : i32
    %c0_i32_1 = arith.constant 0 : i32
    return %c0_i32, %c0_i32_0 : i32, i32
  }
  func.func @transform_4(%arg0: i32) -> (i32, i32) {
    %c0_i32 = arith.constant 0 : i32
    %c0_i32_0 = arith.constant 0 : i32
    %c0_i32_1 = arith.constant 0 : i32
    return %c0_i32, %c0_i32_0 : i32, i32
  }
  func.func @transform_5(%arg0: i32) -> (i32, i32) {
    %c0_i32 = arith.constant 0 : i32
    %c0_i32_0 = arith.constant 0 : i32
    %c0_i32_1 = arith.constant 0 : i32
    return %c0_i32, %c0_i32_0 : i32, i32
  }
  func.func @transform_6(%arg0: i32) -> (i32, i32) {
    %c0_i32 = arith.constant 0 : i32
    %c0_i32_0 = arith.constant 0 : i32
    return %c0_i32, %arg0 : i32, i32
  }
}

</mosaic_0001>

<llo_original>
// kernel: tpu_custom_call.1
$region0: #{tpu_custom_call.1}
  #allocation0 [shape = 'u32[]', space=smem, size = 0x4, offset = 0x4, fixed_abs, tag = 'smem constant byte address 0x4 - core index']
  #allocation1 [shape = 'u32[144,128]{1,0:T(1,128)}', space=vmem, size = 0x12000, scoped, tag = 'internal scratch']
  %s0 = inlined_call_operand.hbm [shape: s32[2,256], index: 0, kind: input, shape index: {}]
  %s1 = inlined_call_operand.vmem [shape: f32[16,256], index: 1, kind: input, shape index: {}]
  %s2 = inlined_call_operand.vmem [shape: f32[32,16], index: 2, kind: input, shape index: {}]
  %s3 = inlined_call_operand.hbm [shape: f32[32,128], index: 3, kind: input, shape index: {}]
  %s4 = inlined_call_operand.hbm [shape: f32[32,128], index: 4, kind: input, shape index: {}]
  %s5 = inlined_call_operand.vmem [shape: f32[32,32], index: 5, kind: input, shape index: {}]
  %s6 = inlined_call_operand.hbm [shape: f32[32,256], index: 6, kind: output, shape index: {}]
  %s7 = sld [smem:[#allocation0]]
  $region46: #{tpu_custom_call.1} parent=0
    _
  %s9 = ssub.s32 1, %s7
  %s10 = scalar_select 0, %s9, %s7
  $region1: #{tpu_custom_call.1} parent=0
    #allocation2 [shape = 'u8[2048]{0}', space=vmem, size = 0x800, scoped, tag = 'input window, operand 0, single buffered']
    #allocation3 [shape = 's32[1]{0}', space=sflag, size = 0x4, scoped, tag = 'scoped memory for tpu_custom_call.1']
    #allocation4 [shape = 's32[1]{0}', space=sflag, size = 0x4, scoped, tag = 'scoped memory for tpu_custom_call.1']
    #allocation5 [shape = 'u8[16384]{0}', space=vmem, size = 0x4000, scoped, tag = 'input window, operand 3, single buffered']
    #allocation6 [shape = 's32[1]{0}', space=sflag, size = 0x4, scoped, tag = 'scoped memory for tpu_custom_call.1']
    #allocation7 [shape = 'u8[16384]{0}', space=vmem, size = 0x4000, scoped, tag = 'input window, operand 4, single buffered']
    #allocation8 [shape = 'u8[32768]{0}', space=vmem, size = 0x8000, scoped, tag = 'output window, operand 0, single buffered']
    %11 = vsyncpa [#allocation3], 0
    %12 = vsyncpa [#allocation6], 0
    %13 = vsyncpa [#allocation4], 0
    // Predicated region
    $region2: #{tpu_custom_call.1} parent=1 // pred_check
      _
    $region3: #{tpu_custom_call.1} parent=1 // pred_check_branch
      %15 = sbr.rel (0) target = $region5
    $region4: #{tpu_custom_call.1} parent=1 // pred_region
      %s17 = ssub.s32 64, 64
      %18 = vsyncadd [#allocation3], %s17
      %s20 = sshll.u32 [#allocation2], 4
      %s21 = int_to_ptr.vmem [resolvable:$true] %s20
      %23 = dma.hbm_to_vmem [thread:$0]  %s0, 64, %s21, [#allocation3]
    $region5: #{tpu_custom_call.1} parent=1 // pred_fallthru
      _
    // Predicated region
    $region6: #{tpu_custom_call.1} parent=1 // pred_check
      _
    $region7: #{tpu_custom_call.1} parent=1 // pred_check_branch
      %25 = sbr.rel (0) target = $region9
    $region8: #{tpu_custom_call.1} parent=1 // pred_region
      _
    $region9: #{tpu_custom_call.1} parent=1 // pred_fallthru
      _
    // Predicated region
    $region10: #{tpu_custom_call.1} parent=1 // pred_check
      _
    $region11: #{tpu_custom_call.1} parent=1 // pred_check_branch
      %27 = sbr.rel (0) target = $region13
    $region12: #{tpu_custom_call.1} parent=1 // pred_region
      _
    $region13: #{tpu_custom_call.1} parent=1 // pred_fallthru
      _
    // Predicated region
    $region14: #{tpu_custom_call.1} parent=1 // pred_check
      _
    $region15: #{tpu_custom_call.1} parent=1 // pred_check_branch
      %29 = sbr.rel (0) target = $region17
    $region16: #{tpu_custom_call.1} parent=1 // pred_region
      %s31 = ssub.s32 512, 512
      %32 = vsyncadd [#allocation6], %s31
      %s33 = sshll.u32 [#allocation5], 4
      %s34 = int_to_ptr.vmem [resolvable:$true] %s33
      %39 = dma.hbm_to_vmem [thread:$0]  %s3, 512, %s34, [#allocation6], 128, 128, 8
    $region17: #{tpu_custom_call.1} parent=1 // pred_fallthru
      _
    // Predicated region
    $region18: #{tpu_custom_call.1} parent=1 // pred_check
      _
    $region19: #{tpu_custom_call.1} parent=1 // pred_check_branch
      %41 = sbr.rel (0) target = $region21
    $region20: #{tpu_custom_call.1} parent=1 // pred_region
      %s43 = ssub.s32 512, 512
      %44 = vsyncadd [#allocation6], %s43
      %s45 = sshll.u32 [#allocation7], 4
      %s46 = int_to_ptr.vmem [resolvable:$true] %s45
      %51 = dma.hbm_to_vmem [thread:$0]  %s4, 512, %s46, [#allocation6], 128, 128, 8
    $region21: #{tpu_custom_call.1} parent=1 // pred_fallthru
      _
    // Predicated region
    $region22: #{tpu_custom_call.1} parent=1 // pred_check
      _
    $region23: #{tpu_custom_call.1} parent=1 // pred_check_branch
      %53 = sbr.rel (0) target = $region25
    $region24: #{tpu_custom_call.1} parent=1 // pred_region
      _
    $region25: #{tpu_custom_call.1} parent=1 // pred_fallthru
      _
    // Predicated region
    $region26: #{tpu_custom_call.1} parent=1 // pred_check
      _
    $region27: #{tpu_custom_call.1} parent=1 // pred_check_branch
      %55 = sbr.rel (0) target = $region29
    $region28: #{tpu_custom_call.1} parent=1 // pred_region
      %56 = dma.done [#allocation3], 64
    $region29: #{tpu_custom_call.1} parent=1 // pred_fallthru
      _
    // Predicated region
    $region30: #{tpu_custom_call.1} parent=1 // pred_check
      _
    $region31: #{tpu_custom_call.1} parent=1 // pred_check_branch
      %58 = sbr.rel (0) target = $region33
    $region32: #{tpu_custom_call.1} parent=1 // pred_region
      %59 = dma.done [#allocation6], 512
    $region33: #{tpu_custom_call.1} parent=1 // pred_fallthru
      _
    // Predicated region
    $region34: #{tpu_custom_call.1} parent=1 // pred_check
      _
    $region35: #{tpu_custom_call.1} parent=1 // pred_check_branch
      %61 = sbr.rel (0) target = $region37
    $region36: #{tpu_custom_call.1} parent=1 // pred_region
      %62 = dma.done [#allocation6], 512
    $region37: #{tpu_custom_call.1} parent=1 // pred_fallthru
      _
    %v63 = vld [vmem:[#allocation2] sm:$0xf]
    %v64 = vlaneseq
    %v65 = vshrl.u32 %v64, 7
    %v66 = vadd.s32 %v65, 8
    %v67 = vadd.s32 %v65, 16
    %v68 = vadd.s32 %v65, 24
    %v69 = vadd.s32 %v65, 32
    %v70 = vadd.s32 %v65, 40
    %v71 = vadd.s32 %v65, 48
    %v72 = vadd.s32 %v65, 56
    %v73 = vadd.s32 %v65, 64
    %v74 = vadd.s32 %v65, 72
    %v75 = vadd.s32 %v65, 80
    %v76 = vadd.s32 %v65, 88
    %v77 = vadd.s32 %v65, 96
    %v78 = vadd.s32 %v65, 104
    %v79 = vadd.s32 %v65, 112
    %v80 = vadd.s32 %v65, 120
    %v81 = vlaneseq
    %v82 = vshrl.u32 %v81, 7
    %v83 = vsub.s32 0, %v82
    %v84 = vrot.slane %v63, %v83
    %v85 = vlaneseq
    %v86 = vshrl.u32 %v85, 7
    %v87 = vsub.s32 2, %v86
    %v88 = vrot.slane %v63, %v87
    %v89 = vlaneseq
    %v90 = vshrl.u32 %v89, 7
    %v91 = vsub.s32 0, %v90
    %v92 = vrot.slane %v84, %v91
    %v93 = vlaneseq
    %v94 = vshrl.u32 %v93, 7
    %v95 = vsub.s32 0, %v94
    %v96 = vrot.slane %v88, %v95
    %vm97 = vcmp.eq.s32.totalorder %v65, %v92
    %vm98 = vcmp.eq.s32.totalorder %v65, %v96
    %vm99 = vcmp.eq.s32.totalorder %v66, %v92
    %vm100 = vcmp.eq.s32.totalorder %v66, %v96
    %vm101 = vcmp.eq.s32.totalorder %v67, %v92
    %vm102 = vcmp.eq.s32.totalorder %v67, %v96
    %vm103 = vcmp.eq.s32.totalorder %v68, %v92
    %vm104 = vcmp.eq.s32.totalorder %v68, %v96
    %vm105 = vcmp.eq.s32.totalorder %v69, %v92
    %vm106 = vcmp.eq.s32.totalorder %v69, %v96
    %vm107 = vcmp.eq.s32.totalorder %v70, %v92
    %vm108 = vcmp.eq.s32.totalorder %v70, %v96
    %vm109 = vcmp.eq.s32.totalorder %v71, %v92
    %vm110 = vcmp.eq.s32.totalorder %v71, %v96
    %vm111 = vcmp.eq.s32.totalorder %v72, %v92
    %vm112 = vcmp.eq.s32.totalorder %v72, %v96
    %vm113 = vcmp.eq.s32.totalorder %v73, %v92
    %vm114 = vcmp.eq.s32.totalorder %v73, %v96
    %vm115 = vcmp.eq.s32.totalorder %v74, %v92
    %vm116 = vcmp.eq.s32.totalorder %v74, %v96
    %vm117 = vcmp.eq.s32.totalorder %v75, %v92
    %vm118 = vcmp.eq.s32.totalorder %v75, %v96
    %vm119 = vcmp.eq.s32.totalorder %v76, %v92
    %vm120 = vcmp.eq.s32.totalorder %v76, %v96
    %vm121 = vcmp.eq.s32.totalorder %v77, %v92
    %vm122 = vcmp.eq.s32.totalorder %v77, %v96
    %vm123 = vcmp.eq.s32.totalorder %v78, %v92
    %vm124 = vcmp.eq.s32.totalorder %v78, %v96
    %vm125 = vcmp.eq.s32.totalorder %v79, %v92
    %vm126 = vcmp.eq.s32.totalorder %v79, %v96
    %vm127 = vcmp.eq.s32.totalorder %v80, %v92
    %vm128 = vcmp.eq.s32.totalorder %v80, %v96
    %v129 = vsel %vm97, 1, 0
    %v130 = vsel %vm98, 1, 0
    %v131 = vsel %vm99, 1, 0
    %v132 = vsel %vm100, 1, 0
    %v133 = vsel %vm101, 1, 0
    %v134 = vsel %vm102, 1, 0
    %v135 = vsel %vm103, 1, 0
    %v136 = vsel %vm104, 1, 0
    %v137 = vsel %vm105, 1, 0
    %v138 = vsel %vm106, 1, 0
    %v139 = vsel %vm107, 1, 0
    %v140 = vsel %vm108, 1, 0
    %v141 = vsel %vm109, 1, 0
    %v142 = vsel %vm110, 1, 0
    %v143 = vsel %vm111, 1, 0
    %v144 = vsel %vm112, 1, 0
    %v145 = vsel %vm113, 1, 0
    %v146 = vsel %vm114, 1, 0
    %v147 = vsel %vm115, 1, 0
    %v148 = vsel %vm116, 1, 0
    %v149 = vsel %vm117, 1, 0
    %v150 = vsel %vm118, 1, 0
    %v151 = vsel %vm119, 1, 0
    %v152 = vsel %vm120, 1, 0
    %v153 = vsel %vm121, 1, 0
    %v154 = vsel %vm122, 1, 0
    %v155 = vsel %vm123, 1, 0
    %v156 = vsel %vm124, 1, 0
    %v157 = vsel %vm125, 1, 0
    %v158 = vsel %vm126, 1, 0
    %v159 = vsel %vm127, 1, 0
    %v160 = vsel %vm128, 1, 0
    %v161 = vcvt.s32.f32 %v129
    %v162 = vcvt.s32.f32 %v130
    %v163 = vcvt.s32.f32 %v131
    %v164 = vcvt.s32.f32 %v132
    %v165 = vcvt.s32.f32 %v133
    %v166 = vcvt.s32.f32 %v134
    %v167 = vcvt.s32.f32 %v135
    %v168 = vcvt.s32.f32 %v136
    %v169 = vcvt.s32.f32 %v137
    %v170 = vcvt.s32.f32 %v138
    %v171 = vcvt.s32.f32 %v139
    %v172 = vcvt.s32.f32 %v140
    %v173 = vcvt.s32.f32 %v141
    %v174 = vcvt.s32.f32 %v142
    %v175 = vcvt.s32.f32 %v143
    %v176 = vcvt.s32.f32 %v144
    %v177 = vcvt.s32.f32 %v145
    %v178 = vcvt.s32.f32 %v146
    %v179 = vcvt.s32.f32 %v147
    %v180 = vcvt.s32.f32 %v148
    %v181 = vcvt.s32.f32 %v149
    %v182 = vcvt.s32.f32 %v150
    %v183 = vcvt.s32.f32 %v151
    %v184 = vcvt.s32.f32 %v152
    %v185 = vcvt.s32.f32 %v153
    %v186 = vcvt.s32.f32 %v154
    %v187 = vcvt.s32.f32 %v155
    %v188 = vcvt.s32.f32 %v156
    %v189 = vcvt.s32.f32 %v157
    %v190 = vcvt.s32.f32 %v158
    %v191 = vcvt.s32.f32 %v159
    %v192 = vcvt.s32.f32 %v160
    %v193 = vlaneseq
    %v194 = vshrl.u32 %v193, 7
    %v195 = vsub.s32 1, %v194
    %v196 = vrot.slane %v63, %v195
    %v197 = vlaneseq
    %v198 = vshrl.u32 %v197, 7
    %v199 = vsub.s32 3, %v198
    %v200 = vrot.slane %v63, %v199
    %v201 = vlaneseq
    %v202 = vshrl.u32 %v201, 7
    %v203 = vsub.s32 1, %v202
    %v204 = vrot.slane %v196, %v203
    %v205 = vlaneseq
    %v206 = vshrl.u32 %v205, 7
    %v207 = vsub.s32 1, %v206
    %v208 = vrot.slane %v200, %v207
    %vm209 = vcmp.eq.s32.totalorder %v65, %v204
    %vm210 = vcmp.eq.s32.totalorder %v65, %v208
    %vm211 = vcmp.eq.s32.totalorder %v66, %v204
    %vm212 = vcmp.eq.s32.totalorder %v66, %v208
    %vm213 = vcmp.eq.s32.totalorder %v67, %v204
    %vm214 = vcmp.eq.s32.totalorder %v67, %v208
    %vm215 = vcmp.eq.s32.totalorder %v68, %v204
    %vm216 = vcmp.eq.s32.totalorder %v68, %v208
    %vm217 = vcmp.eq.s32.totalorder %v69, %v204
    %vm218 = vcmp.eq.s32.totalorder %v69, %v208
    %vm219 = vcmp.eq.s32.totalorder %v70, %v204
    %vm220 = vcmp.eq.s32.totalorder %v70, %v208
    %vm221 = vcmp.eq.s32.totalorder %v71, %v204
    %vm222 = vcmp.eq.s32.totalorder %v71, %v208
    %vm223 = vcmp.eq.s32.totalorder %v72, %v204
    %vm224 = vcmp.eq.s32.totalorder %v72, %v208
    %vm225 = vcmp.eq.s32.totalorder %v73, %v204
    %vm226 = vcmp.eq.s32.totalorder %v73, %v208
    %vm227 = vcmp.eq.s32.totalorder %v74, %v204
    %vm228 = vcmp.eq.s32.totalorder %v74, %v208
    %vm229 = vcmp.eq.s32.totalorder %v75, %v204
    %vm230 = vcmp.eq.s32.totalorder %v75, %v208
    %vm231 = vcmp.eq.s32.totalorder %v76, %v204
    %vm232 = vcmp.eq.s32.totalorder %v76, %v208
    %vm233 = vcmp.eq.s32.totalorder %v77, %v204
    %vm234 = vcmp.eq.s32.totalorder %v77, %v208
    %vm235 = vcmp.eq.s32.totalorder %v78, %v204
    %vm236 = vcmp.eq.s32.totalorder %v78, %v208
    %vm237 = vcmp.eq.s32.totalorder %v79, %v204
    %vm238 = vcmp.eq.s32.totalorder %v79, %v208
    %vm239 = vcmp.eq.s32.totalorder %v80, %v204
    %vm240 = vcmp.eq.s32.totalorder %v80, %v208
    %v241 = vsel %vm209, 1, 0
    %v242 = vsel %vm210, 1, 0
    %v243 = vsel %vm211, 1, 0
    %v244 = vsel %vm212, 1, 0
    %v245 = vsel %vm213, 1, 0
    %v246 = vsel %vm214, 1, 0
    %v247 = vsel %vm215, 1, 0
    %v248 = vsel %vm216, 1, 0
    %v249 = vsel %vm217, 1, 0
    %v250 = vsel %vm218, 1, 0
    %v251 = vsel %vm219, 1, 0
    %v252 = vsel %vm220, 1, 0
    %v253 = vsel %vm221, 1, 0
    %v254 = vsel %vm222, 1, 0
    %v255 = vsel %vm223, 1, 0
    %v256 = vsel %vm224, 1, 0
    %v257 = vsel %vm225, 1, 0
    %v258 = vsel %vm226, 1, 0
    %v259 = vsel %vm227, 1, 0
    %v260 = vsel %vm228, 1, 0
    %v261 = vsel %vm229, 1, 0
    %v262 = vsel %vm230, 1, 0
    %v263 = vsel %vm231, 1, 0
    %v264 = vsel %vm232, 1, 0
    %v265 = vsel %vm233, 1, 0
    %v266 = vsel %vm234, 1, 0
    %v267 = vsel %vm235, 1, 0
    %v268 = vsel %vm236, 1, 0
    %v269 = vsel %vm237, 1, 0
    %v270 = vsel %vm238, 1, 0
    %v271 = vsel %vm239, 1, 0
    %v272 = vsel %vm240, 1, 0
    %v273 = vcvt.s32.f32 %v241
    %v274 = vcvt.s32.f32 %v242
    %v275 = vcvt.s32.f32 %v243
    %v276 = vcvt.s32.f32 %v244
    %v277 = vcvt.s32.f32 %v245
    %v278 = vcvt.s32.f32 %v246
    %v279 = vcvt.s32.f32 %v247
    %v280 = vcvt.s32.f32 %v248
    %v281 = vcvt.s32.f32 %v249
    %v282 = vcvt.s32.f32 %v250
    %v283 = vcvt.s32.f32 %v251
    %v284 = vcvt.s32.f32 %v252
    %v285 = vcvt.s32.f32 %v253
    %v286 = vcvt.s32.f32 %v254
    %v287 = vcvt.s32.f32 %v255
    %v288 = vcvt.s32.f32 %v256
    %v289 = vcvt.s32.f32 %v257
    %v290 = vcvt.s32.f32 %v258
    %v291 = vcvt.s32.f32 %v259
    %v292 = vcvt.s32.f32 %v260
    %v293 = vcvt.s32.f32 %v261
    %v294 = vcvt.s32.f32 %v262
    %v295 = vcvt.s32.f32 %v263
    %v296 = vcvt.s32.f32 %v264
    %v297 = vcvt.s32.f32 %v265
    %v298 = vcvt.s32.f32 %v266
    %v299 = vcvt.s32.f32 %v267
    %v300 = vcvt.s32.f32 %v268
    %v301 = vcvt.s32.f32 %v269
    %v302 = vcvt.s32.f32 %v270
    %v303 = vcvt.s32.f32 %v271
    %v304 = vcvt.s32.f32 %v272
    %v305 = vld [vmem:[#allocation5] sm:$0xff]
    %v306 = vld [vmem:[#allocation5 + $0x8] sm:$0xff]
    %v307 = vld [vmem:[#allocation5 + $0x10] sm:$0xff]
    %v308 = vld [vmem:[#allocation5 + $0x18] sm:$0xff]
    %v309 = vld [vmem:[#allocation7] sm:$0xff]
    %v310 = vld [vmem:[#allocation7 + $0x8] sm:$0xff]
    %v311 = vld [vmem:[#allocation7 + $0x10] sm:$0xff]
    %v312 = vld [vmem:[#allocation7 + $0x18] sm:$0xff]
    %313 = vmatprep.subr.mxu0 %v274
    %314 = vmatpush1.msra.mxu0 %v273
    %315 = vmatprep.subr.mxu0 %v276
    %316 = vmatpush1.msra.mxu0 %v275
    %317 = vmatprep.subr.mxu0 %v278
    %318 = vmatpush1.msra.mxu0 %v277
    %319 = vmatprep.subr.mxu0 %v280
    %320 = vmatpush1.msra.mxu0 %v279
    %321 = vmatprep.subr.mxu0 %v282
    %322 = vmatpush1.msra.mxu0 %v281
    %323 = vmatprep.subr.mxu0 %v284
    %324 = vmatpush1.msra.mxu0 %v283
    %325 = vmatprep.subr.mxu0 %v286
    %326 = vmatpush1.msra.mxu0 %v285
    %327 = vmatprep.subr.mxu0 %v288
    %328 = vmatpush1.msra.mxu0 %v287
    %329 = vmatprep.subr.mxu0 %v290
    %330 = vmatpush1.msra.mxu0 %v289
    %331 = vmatprep.subr.mxu0 %v292
    %332 = vmatpush1.msra.mxu0 %v291
    %333 = vmatprep.subr.mxu0 %v294
    %334 = vmatpush1.msra.mxu0 %v293
    %335 = vmatprep.subr.mxu0 %v296
    %336 = vmatpush1.msra.mxu0 %v295
    %337 = vmatprep.subr.mxu0 %v298
    %338 = vmatpush1.msra.mxu0 %v297
    %339 = vmatprep.subr.mxu0 %v300
    %340 = vmatpush1.msra.mxu0 %v299
    %341 = vmatprep.subr.mxu0 %v302
    %342 = vmatpush1.msra.mxu0 %v301
    %343 = vmatprep.subr.mxu0 %v304
    %344 = vmatpush1.msra.mxu0 %v303
    %345 = vmatprep.subr.mxu0 0.0
    %346 = vmatpush1.msra.mxu0 0.0
    %347 = vmatprep.subr.mxu0 0.0
    %348 = vmatpush1.msra.mxu0 0.0
    %349 = vmatprep.subr.mxu0 0.0
    %350 = vmatpush1.msra.mxu0 0.0
    %351 = vmatprep.subr.mxu0 0.0
    %352 = vmatpush1.msra.mxu0 0.0
    %353 = vmatprep.subr.mxu0 0.0
    %354 = vmatpush1.msra.mxu0 0.0
    %355 = vmatprep.subr.mxu0 0.0
    %356 = vmatpush1.msra.mxu0 0.0
    %357 = vmatprep.subr.mxu0 0.0
    %358 = vmatpush1.msra.mxu0 0.0
    %359 = vmatprep.subr.mxu0 0.0
    %360 = vmatpush1.msra.mxu0 0.0
    %361 = vmatprep.subr.mxu0 0.0
    %362 = vmatpush1.msra.mxu0 0.0
    %363 = vmatprep.subr.mxu0 0.0
    %364 = vmatpush1.msra.mxu0 0.0
    %365 = vmatprep.subr.mxu0 0.0
    %366 = vmatpush1.msra.mxu0 0.0
    %367 = vmatprep.subr.mxu0 0.0
    %368 = vmatpush1.msra.mxu0 0.0
    %369 = vmatprep.subr.mxu0 0.0
    %370 = vmatpush1.msra.mxu0 0.0
    %371 = vmatprep.subr.mxu0 0.0
    %372 = vmatpush1.msra.mxu0 0.0
    %373 = vmatprep.subr.mxu0 0.0
    %374 = vmatpush1.msra.mxu0 0.0
    %375 = vmatprep.subr.mxu0 0.0
    %376 = vmatpush1.msra.mxu0 0.0
    %377 = vmatprep.mubr.f32.mxu0 0.0
    %378 = vmatmul.mubr.f32.gmra.mrb[0].mxu0 %v309
    %v379 = vpop.f32.mrb[0].mxu0
    %v380 = vadd.f32 0.0, %v379
    %v381 = vpop.f32.mrb[0].mxu0
    %v382 = vadd.f32 0.0, %v381
    %383 = vmatprep.mubr.f32.mxu0 0.0
    %384 = vmatmul.mubr.f32.gmra.mrb[0].mxu0 %v310
    %v385 = vpop.f32.mrb[0].mxu0
    %v386 = vadd.f32 0.0, %v385
    %v387 = vpop.f32.mrb[0].mxu0
    %v388 = vadd.f32 0.0, %v387
    %389 = vmatprep.mubr.f32.mxu0 0.0
    %390 = vmatmul.mubr.f32.gmra.mrb[0].mxu0 %v311
    %v391 = vpop.f32.mrb[0].mxu0
    %v392 = vadd.f32 0.0, %v391
    %v393 = vpop.f32.mrb[0].mxu0
    %v394 = vadd.f32 0.0, %v393
    %395 = vmatprep.mubr.f32.mxu0 0.0
    %396 = vmatmul.mubr.f32.gmra.mrb[0].mxu0 %v312
    %v397 = vpop.f32.mrb[0].mxu0
    %v398 = vadd.f32 0.0, %v397
    %v399 = vpop.f32.mrb[0].mxu0
    %v400 = vadd.f32 0.0, %v399
    %401 = vdwg.mxu0
    %402 = vmatprep.subr.mxu0 %v162
    %403 = vmatpush1.msra.mxu0 %v161
    %404 = vmatprep.subr.mxu0 %v164
    %405 = vmatpush1.msra.mxu0 %v163
    %406 = vmatprep.subr.mxu0 %v166
    %407 = vmatpush1.msra.mxu0 %v165
    %408 = vmatprep.subr.mxu0 %v168
    %409 = vmatpush1.msra.mxu0 %v167
    %410 = vmatprep.subr.mxu0 %v170
    %411 = vmatpush1.msra.mxu0 %v169
    %412 = vmatprep.subr.mxu0 %v172
    %413 = vmatpush1.msra.mxu0 %v171
    %414 = vmatprep.subr.mxu0 %v174
    %415 = vmatpush1.msra.mxu0 %v173
    %416 = vmatprep.subr.mxu0 %v176
    %417 = vmatpush1.msra.mxu0 %v175
    %418 = vmatprep.subr.mxu0 %v178
    %419 = vmatpush1.msra.mxu0 %v177
    %420 = vmatprep.subr.mxu0 %v180
    %421 = vmatpush1.msra.mxu0 %v179
    %422 = vmatprep.subr.mxu0 %v182
    %423 = vmatpush1.msra.mxu0 %v181
    %424 = vmatprep.subr.mxu0 %v184
    %425 = vmatpush1.msra.mxu0 %v183
    %426 = vmatprep.subr.mxu0 %v186
    %427 = vmatpush1.msra.mxu0 %v185
    %428 = vmatprep.subr.mxu0 %v188
    %429 = vmatpush1.msra.mxu0 %v187
    %430 = vmatprep.subr.mxu0 %v190
    %431 = vmatpush1.msra.mxu0 %v189
    %432 = vmatprep.subr.mxu0 %v192
    %433 = vmatpush1.msra.mxu0 %v191
    %434 = vmatprep.subr.mxu0 0.0
    %435 = vmatpush1.msra.mxu0 0.0
    %436 = vmatprep.subr.mxu0 0.0
    %437 = vmatpush1.msra.mxu0 0.0
    %438 = vmatprep.subr.mxu0 0.0
    %439 = vmatpush1.msra.mxu0 0.0
    %440 = vmatprep.subr.mxu0 0.0
    %441 = vmatpush1.msra.mxu0 0.0
    %442 = vmatprep.subr.mxu0 0.0
    %443 = vmatpush1.msra.mxu0 0.0
    %444 = vmatprep.subr.mxu0 0.0
    %445 = vmatpush1.msra.mxu0 0.0
    %446 = vmatprep.subr.mxu0 0.0
    %447 = vmatpush1.msra.mxu0 0.0
    %448 = vmatprep.subr.mxu0 0.0
    %449 = vmatpush1.msra.mxu0 0.0
    %450 = vmatprep.subr.mxu0 0.0
    %451 = vmatpush1.msra.mxu0 0.0
    %452 = vmatprep.subr.mxu0 0.0
    %453 = vmatpush1.msra.mxu0 0.0
    %454 = vmatprep.subr.mxu0 0.0
    %455 = vmatpush1.msra.mxu0 0.0
    %456 = vmatprep.subr.mxu0 0.0
    %457 = vmatpush1.msra.mxu0 0.0
    %458 = vmatprep.subr.mxu0 0.0
    %459 = vmatpush1.msra.mxu0 0.0
    %460 = vmatprep.subr.mxu0 0.0
    %461 = vmatpush1.msra.mxu0 0.0
    %462 = vmatprep.subr.mxu0 0.0
    %463 = vmatpush1.msra.mxu0 0.0
    %464 = vmatprep.subr.mxu0 0.0
    %465 = vmatpush1.msra.mxu0 0.0
    %466 = vmatprep.mubr.f32.mxu0 0.0
    %467 = vmatmul.mubr.f32.gmra.mrb[0].mxu0 %v305
    %v468 = vpop.f32.mrb[0].mxu0
    %v469 = vadd.f32 %v380, %v468
    %v470 = vpop.f32.mrb[0].mxu0
    %v471 = vadd.f32 %v382, %v470
    %472 = vmatprep.mubr.f32.mxu0 0.0
    %473 = vmatmul.mubr.f32.gmra.mrb[0].mxu0 %v306
    %v474 = vpop.f32.mrb[0].mxu0
    %v475 = vadd.f32 %v386, %v474
    %v476 = vpop.f32.mrb[0].mxu0
    %v477 = vadd.f32 %v388, %v476
    %478 = vmatprep.mubr.f32.mxu0 0.0
    %479 = vmatmul.mubr.f32.gmra.mrb[0].mxu0 %v307
    %v480 = vpop.f32.mrb[0].mxu0
    %v481 = vadd.f32 %v392, %v480
    %v482 = vpop.f32.mrb[0].mxu0
    %v483 = vadd.f32 %v394, %v482
    %484 = vmatprep.mubr.f32.mxu0 0.0
    %485 = vmatmul.mubr.f32.gmra.mrb[0].mxu0 %v308
    %v486 = vpop.f32.mrb[0].mxu0
    %v487 = vadd.f32 %v398, %v486
    %v488 = vpop.f32.mrb[0].mxu0
    %v489 = vadd.f32 %v400, %v488
    %490 = vdwg.mxu0
    %v491 = vld [vmem:[%s2] sm:$0xff]
    %v492 = vld [vmem:[%s2 + $0x8] sm:$0xff]
    %v493 = vld [vmem:[%s2 + $0x10] sm:$0xff]
    %v494 = vld [vmem:[%s2 + $0x18] sm:$0xff]
    %v495 = vld [vmem:[%s1] sm:$0xff]
    %v496 = vld [vmem:[%s1 + $0x8] sm:$0xff]
    %v497 = vld [vmem:[%s1 + $0x10] sm:$0xff]
    %v498 = vld [vmem:[%s1 + $0x18] sm:$0xff]
    %vm499 = vcmask 130048
    %v501 = vsel %vm499, %v491, 0
    %v504 = vsel %vm499, %v492, 0
    %v507 = vsel %vm499, %v493, 0
    %v510 = vsel %vm499, %v494, 0
    %512 = vmatprep.subr.mxu0 %v496
    %513 = vmatpush1.msra.mxu0 %v495
    %514 = vmatprep.subr.mxu0 %v498
    %515 = vmatpush1.msra.mxu0 %v497
    %516 = vmatprep.subr.mxu0 0.0
    %517 = vmatpush1.msra.mxu0 0.0
    %518 = vmatprep.subr.mxu0 0.0
    %519 = vmatpush1.msra.mxu0 0.0
    %520 = vmatprep.subr.mxu0 0.0
    %521 = vmatpush1.msra.mxu0 0.0
    %522 = vmatprep.subr.mxu0 0.0
    %523 = vmatpush1.msra.mxu0 0.0
    %524 = vmatprep.subr.mxu0 0.0
    %525 = vmatpush1.msra.mxu0 0.0
    %526 = vmatprep.subr.mxu0 0.0
    %527 = vmatpush1.msra.mxu0 0.0
    %528 = vmatprep.subr.mxu0 0.0
    %529 = vmatpush1.msra.mxu0 0.0
    %530 = vmatprep.subr.mxu0 0.0
    %531 = vmatpush1.msra.mxu0 0.0
    %532 = vmatprep.subr.mxu0 0.0
    %533 = vmatpush1.msra.mxu0 0.0
    %534 = vmatprep.subr.mxu0 0.0
    %535 = vmatpush1.msra.mxu0 0.0
    %536 = vmatprep.subr.mxu0 0.0
    %537 = vmatpush1.msra.mxu0 0.0
    %538 = vmatprep.subr.mxu0 0.0
    %539 = vmatpush1.msra.mxu0 0.0
    %540 = vmatprep.subr.mxu0 0.0
    %541 = vmatpush1.msra.mxu0 0.0
    %542 = vmatprep.subr.mxu0 0.0
    %543 = vmatpush1.msra.mxu0 0.0
    %544 = vmatprep.subr.mxu0 0.0
    %545 = vmatpush1.msra.mxu0 0.0
    %546 = vmatprep.subr.mxu0 0.0
    %547 = vmatpush1.msra.mxu0 0.0
    %548 = vmatprep.subr.mxu0 0.0
    %549 = vmatpush1.msra.mxu0 0.0
    %550 = vmatprep.subr.mxu0 0.0
    %551 = vmatpush1.msra.mxu0 0.0
    %552 = vmatprep.subr.mxu0 0.0
    %553 = vmatpush1.msra.mxu0 0.0
    %554 = vmatprep.subr.mxu0 0.0
    %555 = vmatpush1.msra.mxu0 0.0
    %556 = vmatprep.subr.mxu0 0.0
    %557 = vmatpush1.msra.mxu0 0.0
    %558 = vmatprep.subr.mxu0 0.0
    %559 = vmatpush1.msra.mxu0 0.0
    %560 = vmatprep.subr.mxu0 0.0
    %561 = vmatpush1.msra.mxu0 0.0
    %562 = vmatprep.subr.mxu0 0.0
    %563 = vmatpush1.msra.mxu0 0.0
    %564 = vmatprep.subr.mxu0 0.0
    %565 = vmatpush1.msra.mxu0 0.0
    %566 = vmatprep.subr.mxu0 0.0
    %567 = vmatpush1.msra.mxu0 0.0
    %568 = vmatprep.subr.mxu0 0.0
    %569 = vmatpush1.msra.mxu0 0.0
    %570 = vmatprep.subr.mxu0 0.0
    %571 = vmatpush1.msra.mxu0 0.0
    %572 = vmatprep.subr.mxu0 0.0
    %573 = vmatpush1.msra.mxu0 0.0
    %574 = vmatprep.subr.mxu0 0.0
    %575 = vmatpush1.msra.mxu0 0.0
    %576 = vmatprep.mubr.f32.mxu0 0.0
    %577 = vmatmul.mubr.f32.gmra.mrb[0].mxu0 %v501
    %v578 = vpop.f32.mrb[0].mxu0
    %v579 = vadd.f32 0.0, %v578
    %v580 = vpop.f32.mrb[0].mxu0
    %v581 = vadd.f32 0.0, %v580
    %582 = vmatprep.mubr.f32.mxu0 0.0
    %583 = vmatmul.mubr.f32.gmra.mrb[0].mxu0 %v504
    %v584 = vpop.f32.mrb[0].mxu0
    %v585 = vadd.f32 0.0, %v584
    %v586 = vpop.f32.mrb[0].mxu0
    %v587 = vadd.f32 0.0, %v586
    %588 = vmatprep.mubr.f32.mxu0 0.0
    %589 = vmatmul.mubr.f32.gmra.mrb[0].mxu0 %v507
    %v590 = vpop.f32.mrb[0].mxu0
    %v591 = vadd.f32 0.0, %v590
    %v592 = vpop.f32.mrb[0].mxu0
    %v593 = vadd.f32 0.0, %v592
    %594 = vmatprep.mubr.f32.mxu0 0.0
    %595 = vmatmul.mubr.f32.gmra.mrb[0].mxu0 %v510
    %v596 = vpop.f32.mrb[0].mxu0
    %v597 = vadd.f32 0.0, %v596
    %v598 = vpop.f32.mrb[0].mxu0
    %v599 = vadd.f32 0.0, %v598
    %600 = vdwg.mxu0
    %v601 = vsub.f32 0.0, %v579
    %v602 = vsub.f32 0.0, %v581
    %v603 = vsub.f32 0.0, %v585
    %v604 = vsub.f32 0.0, %v587
    %v605 = vsub.f32 0.0, %v591
    %v606 = vsub.f32 0.0, %v593
    %v607 = vsub.f32 0.0, %v597
    %v608 = vsub.f32 0.0, %v599
    %v609 = vmul.f32 %v601, 1.442695
    %v610 = vpow.pop %v609
    %v611 = vmul.f32 %v602, 1.442695
    %v612 = vpow.pop %v611
    %v613 = vmul.f32 %v603, 1.442695
    %v614 = vpow.pop %v613
    %v615 = vmul.f32 %v604, 1.442695
    %v616 = vpow.pop %v615
    %v617 = vmul.f32 %v605, 1.442695
    %v618 = vpow.pop %v617
    %v619 = vmul.f32 %v606, 1.442695
    %v620 = vpow.pop %v619
    %v621 = vmul.f32 %v607, 1.442695
    %v622 = vpow.pop %v621
    %v623 = vmul.f32 %v608, 1.442695
    %v624 = vpow.pop %v623
    %v625 = vadd.f32 %v610, 1.0
    %v626 = vadd.f32 %v612, 1.0
    %v627 = vadd.f32 %v614, 1.0
    %v628 = vadd.f32 %v616, 1.0
    %v629 = vadd.f32 %v618, 1.0
    %v630 = vadd.f32 %v620, 1.0
    %v631 = vadd.f32 %v622, 1.0
    %v632 = vadd.f32 %v624, 1.0
    %v633 = vrcp.pop %v625
    %v634 = vrcp.pop %v626
    %v635 = vrcp.pop %v627
    %v636 = vrcp.pop %v628
    %v637 = vrcp.pop %v629
    %v638 = vrcp.pop %v630
    %v639 = vrcp.pop %v631
    %v640 = vrcp.pop %v632
    %v641 = vmul.f32 %v579, %v633
    %v642 = vmul.f32 %v581, %v634
    %v643 = vmul.f32 %v585, %v635
    %v644 = vmul.f32 %v587, %v636
    %v645 = vmul.f32 %v591, %v637
    %v646 = vmul.f32 %v593, %v638
    %v647 = vmul.f32 %v597, %v639
    %v648 = vmul.f32 %v599, %v640
    %v649 = vld [vmem:[%s5] sm:$0xff]
    %v650 = vld [vmem:[%s5 + $0x8] sm:$0xff]
    %v651 = vld [vmem:[%s5 + $0x10] sm:$0xff]
    %v652 = vld [vmem:[%s5 + $0x18] sm:$0xff]
    %vm653 = vcmask 261120
    %v655 = vsel %vm653, %v649, 0
    %v658 = vsel %vm653, %v650, 0
    %v661 = vsel %vm653, %v651, 0
    %v664 = vsel %vm653, %v652, 0
    %666 = vmatprep.subr.mxu0 %v642
    %667 = vmatpush1.msra.mxu0 %v641
    %668 = vmatprep.subr.mxu0 %v644
    %669 = vmatpush1.msra.mxu0 %v643
    %670 = vmatprep.subr.mxu0 %v646
    %671 = vmatpush1.msra.mxu0 %v645
    %672 = vmatprep.subr.mxu0 %v648
    %673 = vmatpush1.msra.mxu0 %v647
    %674 = vmatprep.subr.mxu0 0.0
    %675 = vmatpush1.msra.mxu0 0.0
    %676 = vmatprep.subr.mxu0 0.0
    %677 = vmatpush1.msra.mxu0 0.0
    %678 = vmatprep.subr.mxu0 0.0
    %679 = vmatpush1.msra.mxu0 0.0
    %680 = vmatprep.subr.mxu0 0.0
    %681 = vmatpush1.msra.mxu0 0.0
    %682 = vmatprep.subr.mxu0 0.0
    %683 = vmatpush1.msra.mxu0 0.0
    %684 = vmatprep.subr.mxu0 0.0
    %685 = vmatpush1.msra.mxu0 0.0
    %686 = vmatprep.subr.mxu0 0.0
    %687 = vmatpush1.msra.mxu0 0.0
    %688 = vmatprep.subr.mxu0 0.0
    %689 = vmatpush1.msra.mxu0 0.0
    %690 = vmatprep.subr.mxu0 0.0
    %691 = vmatpush1.msra.mxu0 0.0
    %692 = vmatprep.subr.mxu0 0.0
    %693 = vmatpush1.msra.mxu0 0.0
    %694 = vmatprep.subr.mxu0 0.0
    %695 = vmatpush1.msra.mxu0 0.0
    %696 = vmatprep.subr.mxu0 0.0
    %697 = vmatpush1.msra.mxu0 0.0
    %698 = vmatprep.subr.mxu0 0.0
    %699 = vmatpush1.msra.mxu0 0.0
    %700 = vmatprep.subr.mxu0 0.0
    %701 = vmatpush1.msra.mxu0 0.0
    %702 = vmatprep.subr.mxu0 0.0
    %703 = vmatpush1.msra.mxu0 0.0
    %704 = vmatprep.subr.mxu0 0.0
    %705 = vmatpush1.msra.mxu0 0.0
    %706 = vmatprep.subr.mxu0 0.0
    %707 = vmatpush1.msra.mxu0 0.0
    %708 = vmatprep.subr.mxu0 0.0
    %709 = vmatpush1.msra.mxu0 0.0
    %710 = vmatprep.subr.mxu0 0.0
    %711 = vmatpush1.msra.mxu0 0.0
    %712 = vmatprep.subr.mxu0 0.0
    %713 = vmatpush1.msra.mxu0 0.0
    %714 = vmatprep.subr.mxu0 0.0
    %715 = vmatpush1.msra.mxu0 0.0
    %716 = vmatprep.subr.mxu0 0.0
    %717 = vmatpush1.msra.mxu0 0.0
    %718 = vmatprep.subr.mxu0 0.0
    %719 = vmatpush1.msra.mxu0 0.0
    %720 = vmatprep.subr.mxu0 0.0
    %721 = vmatpush1.msra.mxu0 0.0
    %722 = vmatprep.subr.mxu0 0.0
    %723 = vmatpush1.msra.mxu0 0.0
    %724 = vmatprep.subr.mxu0 0.0
    %725 = vmatpush1.msra.mxu0 0.0
    %726 = vmatprep.subr.mxu0 0.0
    %727 = vmatpush1.msra.mxu0 0.0
    %728 = vmatprep.subr.mxu0 0.0
    %729 = vmatpush1.msra.mxu0 0.0
    %730 = vmatprep.mubr.f32.mxu0 0.0
    %731 = vmatmul.mubr.f32.gmra.mrb[0].mxu0 %v655
    %v732 = vpop.f32.mrb[0].mxu0
    %v733 = vadd.f32 0.0, %v732
    %v734 = vpop.f32.mrb[0].mxu0
    %v735 = vadd.f32 0.0, %v734
    %736 = vmatprep.mubr.f32.mxu0 0.0
    %737 = vmatmul.mubr.f32.gmra.mrb[0].mxu0 %v658
    %v738 = vpop.f32.mrb[0].mxu0
    %v739 = vadd.f32 0.0, %v738
    %v740 = vpop.f32.mrb[0].mxu0
    %v741 = vadd.f32 0.0, %v740
    %742 = vmatprep.mubr.f32.mxu0 0.0
    %743 = vmatmul.mubr.f32.gmra.mrb[0].mxu0 %v661
    %v744 = vpop.f32.mrb[0].mxu0
    %v745 = vadd.f32 0.0, %v744
    %v746 = vpop.f32.mrb[0].mxu0
    %v747 = vadd.f32 0.0, %v746
    %748 = vmatprep.mubr.f32.mxu0 0.0
    %749 = vmatmul.mubr.f32.gmra.mrb[0].mxu0 %v664
    %v750 = vpop.f32.mrb[0].mxu0
    %v751 = vadd.f32 0.0, %v750
    %v752 = vpop.f32.mrb[0].mxu0
    %v753 = vadd.f32 0.0, %v752
    %754 = vdwg.mxu0
    %v755 = vadd.f32 %v469, %v733
    %v756 = vadd.f32 %v471, %v735
    %v757 = vadd.f32 %v475, %v739
    %v758 = vadd.f32 %v477, %v741
    %v759 = vadd.f32 %v481, %v745
    %v760 = vadd.f32 %v483, %v747
    %v761 = vadd.f32 %v487, %v751
    %v762 = vadd.f32 %v489, %v753
    %v763 = vsub.f32 0.0, %v755
    %v764 = vsub.f32 0.0, %v756
    %v765 = vsub.f32 0.0, %v757
    %v766 = vsub.f32 0.0, %v758
    %v767 = vsub.f32 0.0, %v759
    %v768 = vsub.f32 0.0, %v760
    %v769 = vsub.f32 0.0, %v761
    %v770 = vsub.f32 0.0, %v762
    %v771 = vmul.f32 %v763, 1.442695
    %v772 = vpow.pop %v771
    %v773 = vmul.f32 %v764, 1.442695
    %v774 = vpow.pop %v773
    %v775 = vmul.f32 %v765, 1.442695
    %v776 = vpow.pop %v775
    %v777 = vmul.f32 %v766, 1.442695
    %v778 = vpow.pop %v777
    %v779 = vmul.f32 %v767, 1.442695
    %v780 = vpow.pop %v779
    %v781 = vmul.f32 %v768, 1.442695
    %v782 = vpow.pop %v781
    %v783 = vmul.f32 %v769, 1.442695
    %v784 = vpow.pop %v783
    %v785 = vmul.f32 %v770, 1.442695
    %v786 = vpow.pop %v785
    %v787 = vadd.f32 %v772, 1.0
    %v788 = vadd.f32 %v774, 1.0
    %v789 = vadd.f32 %v776, 1.0
    %v790 = vadd.f32 %v778, 1.0
    %v791 = vadd.f32 %v780, 1.0
    %v792 = vadd.f32 %v782, 1.0
    %v793 = vadd.f32 %v784, 1.0
    %v794 = vadd.f32 %v786, 1.0
    %v795 = vrcp.pop %v787
    %v796 = vrcp.pop %v788
    %v797 = vrcp.pop %v789
    %v798 = vrcp.pop %v790
    %v799 = vrcp.pop %v791
    %v800 = vrcp.pop %v792
    %v801 = vrcp.pop %v793
    %v802 = vrcp.pop %v794
    %v803 = vmul.f32 %v755, %v795
    %v804 = vmul.f32 %v756, %v796
    %v805 = vmul.f32 %v757, %v797
    %v806 = vmul.f32 %v758, %v798
    %v807 = vmul.f32 %v759, %v799
    %v808 = vmul.f32 %v760, %v800
    %v809 = vmul.f32 %v761, %v801
    %v810 = vmul.f32 %v762, %v802
    %811 = vst [vmem:[#allocation8] sm:$0xff] %v803
    %812 = vst [vmem:[#allocation8 + $0x8] sm:$0xff] %v804
    %813 = vst [vmem:[#allocation8 + $0x10] sm:$0xff] %v805
    %814 = vst [vmem:[#allocation8 + $0x18] sm:$0xff] %v806
    %815 = vst [vmem:[#allocation8 + $0x20] sm:$0xff] %v807
    %816 = vst [vmem:[#allocation8 + $0x28] sm:$0xff] %v808
    %817 = vst [vmem:[#allocation8 + $0x30] sm:$0xff] %v809
    %818 = vst [vmem:[#allocation8 + $0x38] sm:$0xff] %v810
    // Predicated region
    $region38: #{tpu_custom_call.1} parent=1 // pred_check
      _
    $region39: #{tpu_custom_call.1} parent=1 // pred_check_branch
      %820 = sbr.rel (0) target = $region41
    $region40: #{tpu_custom_call.1} parent=1 // pred_region
      %s822 = ssub.s32 1024, 1024
      %823 = vsyncadd [#allocation4], %s822
      %s824 = sshll.u32 [#allocation8], 4
      %s825 = int_to_ptr.vmem [resolvable:$true] %s824
      %830 = dma.vmem_to_hbm [thread:$0]  %s825, 1024, %s6, [#allocation4], 256, 256, 16
    $region41: #{tpu_custom_call.1} parent=1 // pred_fallthru
      _
    // Predicated region
    $region42: #{tpu_custom_call.1} parent=1 // pred_check
      _
    $region43: #{tpu_custom_call.1} parent=1 // pred_check_branch
      %832 = sbr.rel (0) target = $region45
    $region44: #{tpu_custom_call.1} parent=1 // pred_region
      %833 = dma.done [#allocation4], 1024
    $region45: #{tpu_custom_call.1} parent=1 // pred_fallthru
      _
    %834 = vsyncpa [#allocation3], 1
    %835 = vsyncpa [#allocation6], 1
    %836 = vsyncpa [#allocation4], 1

</llo_original>
